<compile_context>
chip_gen: v5e
topology: v5e:2x2
jax: 0.10.0
libtpu: 0.0.40
codegen_flags: <defaults>
</compile_context>

<pallas_src>
import numpy as np
import jax
import jax.numpy as jnp
from jax import lax
from jax.experimental import pallas as pl
from jax.experimental.pallas import tpu as pltpu

# ---- model hyper-parameters (from the PyTorch script) ----
total_UE = 10
num_RU = 3
num_ref = 5                                     # sequence length
predicted_len = 3
HIDDEN = 64
INPUT = total_UE * num_RU                       # 30
OUT = total_UE * num_RU * predicted_len         # 90
OUT_PAD = 128                                   # lane-dense output width


def lstm_fc_kernel(x_ref, wih_ref, whh_ref, b_ref, wfc_ref, bfc_ref, out_ref):
    """Single-invocation LSTM + FC.

    x_ref   : (T*BP, INPUT) f32   time-major, row = t*BP + b (BP = padded batch)
    wih_ref : (INPUT, 4H)   f32   columns ordered [f | i | o | 2*g]
    whh_ref : (2H, 4H)      bf16  rows [W_hh^T ; zeros], cols [f | i | o | 2*g]
    b_ref   : (1, 4H)       f32   b_ih + b_hh, cols [f | i | o | 2*g]
    wfc_ref : (2H, OUT_PAD) f32   rows [W_fc^T ; zeros]
    bfc_ref : (1, OUT_PAD)  f32
    out_ref : (BP, OUT_PAD) f32
    """
    BP = out_ref.shape[0]
    T = x_ref.shape[0] // BP
    H2 = whh_ref.shape[0]          # 2*HIDDEN = 128 (one full vreg of lanes)
    H = H2 // 2

    # One f32 matmul for ALL timesteps' input projections (bias folded in once).
    xg = (jnp.dot(x_ref[...], wih_ref[...], preferred_element_type=jnp.float32)
          + b_ref[...])                               # (T*BP, 4H)
    whh = whh_ref[...]                                # (2H, 4H) bf16

    # Lane mask [0, H) — hoisted out of the loop (no per-iter broadcast).
    half_mask = lax.broadcasted_iota(jnp.int32, (BP, H2), 1) < H

    h_dup = jnp.zeros((BP, H2), jnp.float32)          # [h | junk]  (junk * 0-rows)
    c_dup = jnp.zeros((BP, H2), jnp.float32)          # [c | c]

    # Static unroll of the recurrence: one single-pass bf16 MXU matmul per step.
    for t in range(T):
        gates = xg[t * BP:(t + 1) * BP, :]            # (BP, 4H)
        if t > 0:                                     # h0 == 0 -> skip first matmul
            gates = gates + jnp.dot(h_dup.astype(jnp.bfloat16), whh,
                                    preferred_element_type=jnp.float32)
        s = jax.nn.sigmoid(gates)                     # full 256-lane: [sf|si|so|s(2g)]
        a = s[:, :H2]                                 # [sf | si]     (vreg-aligned)
        b2 = s[:, H2:]                                # [so | s(2g)]  (vreg-aligned)
        tg = 2.0 * b2 - 1.0                           # [2so-1 | tanh(g)]
        p = jnp.where(half_mask, c_dup, tg)           # [c | tanh(g)]
        prod = a * p                                  # [sf*c | si*tanh(g)]
        c_dup = prod + pltpu.roll(prod, shift=H, axis=1)   # [c_new | c_new]
        h_dup = b2 * jnp.tanh(c_dup)                  # [so*tanh(c_new) | junk]

    # Fused final Linear on the last hidden state (junk half hits zero rows).
    out_ref[...] = (jnp.dot(h_dup, wfc_ref[...], preferred_element_type=jnp.float32)
                    + bfc_ref[...])


def _reorder_gates(w):
    """PyTorch gate blocks [i, f, g, o] -> kernel layout [f, i, o, 2*g] (axis 0).

    The 2x scale on the g block realizes tanh(x) = 2*sigmoid(2x) - 1 so the
    kernel can run one full-width sigmoid over all four gates.
    """
    i, f, g, o = jnp.split(w, 4, axis=0)
    return jnp.concatenate([f, i, o, 2.0 * g], axis=0)


def lstm_model_forward(x, params):
    """x: (B, num_ref, total_UE, num_RU) or (B, num_ref, total_UE*num_RU)."""
    B = x.shape[0]
    BP = max(8, -(-B // 8) * 8)                       # pad batch to sublane mult

    x = x.reshape(B, num_ref, INPUT).astype(jnp.float32)    # mirrors torch .view
    x_tm = jnp.transpose(x, (1, 0, 2))                       # (T, B, INPUT)
    x_tm = jnp.pad(x_tm, ((0, 0), (0, BP - B), (0, 0)))      # (T, BP, INPUT)
    x_flat = x_tm.reshape(num_ref * BP, INPUT)               # (T*BP, INPUT)

    wih_t = _reorder_gates(params["w_ih"]).T                 # (INPUT, 4H)
    whh_t = _reorder_gates(params["w_hh"]).T                 # (HIDDEN, 4H)
    whh2 = jnp.concatenate(
        [whh_t, jnp.zeros((HIDDEN, 4 * HIDDEN), jnp.float32)], axis=0
    ).astype(jnp.bfloat16)                                   # (2H, 4H) bf16
    b = _reorder_gates(params["b_ih"] + params["b_hh"]).reshape(1, 4 * HIDDEN)
    wfc_t = jnp.pad(params["w_fc"].T, ((0, 0), (0, OUT_PAD - OUT)))     # (H, 128)
    wfc2 = jnp.concatenate(
        [wfc_t, jnp.zeros((HIDDEN, OUT_PAD), jnp.float32)], axis=0)     # (2H, 128)
    bfc = jnp.pad(params["b_fc"], (0, OUT_PAD - OUT)).reshape(1, OUT_PAD)

    vmem = pl.BlockSpec(memory_space=pltpu.MemorySpace.VMEM)
    y = pl.pallas_call(
        lstm_fc_kernel,
        out_shape=jax.ShapeDtypeStruct((BP, OUT_PAD), jnp.float32),
        in_specs=[vmem] * 6,
        out_specs=vmem,
    )(x_flat, wih_t, whh2, b, wfc2, bfc)

    return y[:B, :OUT].reshape(B, predicted_len, total_UE, num_RU)


def init_params(key):
    """Deterministic init matching PyTorch's U(-1/sqrt(H), 1/sqrt(H)) shapes."""
    k = 1.0 / np.sqrt(HIDDEN)
    keys = jax.random.split(key, 6)
    u = lambda kk, shape: jax.random.uniform(kk, shape, jnp.float32, -k, k)
    return {
        "w_ih": u(keys[0], (4 * HIDDEN, INPUT)),
        "w_hh": u(keys[1], (4 * HIDDEN, HIDDEN)),
        "b_ih": u(keys[2], (4 * HIDDEN,)),
        "b_hh": u(keys[3], (4 * HIDDEN,)),
        "w_fc": u(keys[4], (OUT, HIDDEN)),
        "b_fc": u(keys[5], (OUT,)),
    }


def reference_forward(x, params):
    """Pure-JAX f32 reference (same semantics as the PyTorch module)."""
    B = x.shape[0]
    xs = x.reshape(B, num_ref, INPUT).astype(jnp.float32)
    h = jnp.zeros((B, HIDDEN), jnp.float32)
    c = jnp.zeros((B, HIDDEN), jnp.float32)
    b = params["b_ih"] + params["b_hh"]
    for t in range(num_ref):
        gates = xs[:, t, :] @ params["w_ih"].T + h @ params["w_hh"].T + b
        i_g = jax.nn.sigmoid(gates[:, 0 * HIDDEN:1 * HIDDEN])
        f_g = jax.nn.sigmoid(gates[:, 1 * HIDDEN:2 * HIDDEN])
        g_g = jnp.tanh(gates[:, 2 * HIDDEN:3 * HIDDEN])
        o_g = jax.nn.sigmoid(gates[:, 3 * HIDDEN:4 * HIDDEN])
        c = f_g * c + i_g * g_g
        h = o_g * jnp.tanh(c)
    y = h @ params["w_fc"].T + params["b_fc"]
    return y.reshape(B, predicted_len, total_UE, num_RU)


if __name__ == "__main__":
    key = jax.random.PRNGKey(0)
    pkey, xkey = jax.random.split(key)
    params = init_params(pkey)

    batch = 2
    x = jax.random.normal(xkey, (batch, num_ref, total_UE, num_RU), jnp.float32)

    y = lstm_model_forward(x, params)
    y = jax.block_until_ready(y)

    y_ref = reference_forward(x, params)
    # bf16 recurrence operands (f32 accumulation) vs pure-f32 reference:
    # tolerance loosened per review (~1e-2 scale differences expected).
    np.testing.assert_allclose(np.asarray(y), np.asarray(y_ref),
                               rtol=5e-2, atol=5e-2)
    assert y.shape == (batch, predicted_len, total_UE, num_RU)
    print("KERNEL_OK")
</pallas_src>

<mosaic_0001>
module attributes {stable_mosaic.version = 11 : i64} {
  func.func @lstm_fc_kernel(%arg0: memref<40x30xf32, #tpu.memory_space<vmem>>, %arg1: memref<30x256xf32, #tpu.memory_space<vmem>>, %arg2: memref<128x256xbf16, #tpu.memory_space<vmem>>, %arg3: memref<1x256xf32, #tpu.memory_space<vmem>>, %arg4: memref<128x128xf32, #tpu.memory_space<vmem>>, %arg5: memref<1x128xf32, #tpu.memory_space<vmem>>, %arg6: memref<8x128xf32, #tpu.memory_space<vmem>>) attributes {dimension_semantics = [], scalar_prefetch = 0 : i64, scratch_operands = 0 : i64, tpu.core_type = #tpu.core_type<tc>} {
    %c0 = arith.constant 0 : index
    %c0_0 = arith.constant 0 : index
    %0 = vector.load %arg0[%c0, %c0_0] : memref<40x30xf32, #tpu.memory_space<vmem>>, vector<40x30xf32>
    %c0_1 = arith.constant 0 : index
    %c0_2 = arith.constant 0 : index
    %1 = vector.load %arg1[%c0_1, %c0_2] : memref<30x256xf32, #tpu.memory_space<vmem>>, vector<30x256xf32>
    %cst = arith.constant dense<0.000000e+00> : vector<40x256xf32>
    %2 = tpu.matmul %0, %1, %cst {dimension_numbers = #tpu.dot_dimension_numbers<[1], [0], [0], [1], [0, 0, 1, 1], [], []>} : vector<40x30xf32>, vector<30x256xf32>, vector<40x256xf32> -> vector<40x256xf32>
    %c0_3 = arith.constant 0 : index
    %c0_4 = arith.constant 0 : index
    %3 = vector.load %arg3[%c0_3, %c0_4] : memref<1x256xf32, #tpu.memory_space<vmem>>, vector<1x256xf32>
    %4 = vector.broadcast %3 : vector<1x256xf32> to vector<40x256xf32>
    %5 = arith.addf %2, %4 : vector<40x256xf32>
    %c0_5 = arith.constant 0 : index
    %c0_6 = arith.constant 0 : index
    %6 = vector.load %arg2[%c0_5, %c0_6] : memref<128x256xbf16, #tpu.memory_space<vmem>>, vector<128x256xbf16>
    %7 = tpu.iota {dimensions = array<i32: 1>} : vector<8x128xi32>
    %c64_i32 = arith.constant 64 : i32
    %8 = vector.broadcast %c64_i32 : i32 to vector<8x128xi32>
    %9 = arith.cmpi slt, %7, %8 : vector<8x128xi32>
    %cst_7 = arith.constant 0.000000e+00 : f32
    %10 = vector.broadcast %cst_7 : f32 to vector<8x128xf32>
    %11 = vector.extract_strided_slice %5 {offsets = [0, 0], sizes = [8, 256], strides = [1, 1]} : vector<40x256xf32> to vector<8x256xf32>
    %12 = arith.negf %11 : vector<8x256xf32>
    %13 = math.exp %12 : vector<8x256xf32>
    %cst_8 = arith.constant 1.000000e+00 : f32
    %14 = vector.broadcast %cst_8 : f32 to vector<8x256xf32>
    %15 = arith.addf %14, %13 : vector<8x256xf32>
    %16 = arith.divf %14, %15 : vector<8x256xf32>
    %17 = vector.extract_strided_slice %16 {offsets = [0, 0], sizes = [8, 128], strides = [1, 1]} : vector<8x256xf32> to vector<8x128xf32>
    %18 = vector.extract_strided_slice %16 {offsets = [0, 128], sizes = [8, 128], strides = [1, 1]} : vector<8x256xf32> to vector<8x128xf32>
    %cst_9 = arith.constant 2.000000e+00 : f32
    %19 = vector.broadcast %cst_9 : f32 to vector<8x128xf32>
    %20 = arith.mulf %19, %18 : vector<8x128xf32>
    %cst_10 = arith.constant 1.000000e+00 : f32
    %21 = vector.broadcast %cst_10 : f32 to vector<8x128xf32>
    %22 = arith.subf %20, %21 : vector<8x128xf32>
    %23 = arith.select %9, %10, %22 : vector<8x128xi1>, vector<8x128xf32>
    %24 = arith.mulf %17, %23 : vector<8x128xf32>
    %c64_i32_11 = arith.constant 64 : i32
    %25 = tpu.dynamic_rotate %24 by %c64_i32_11 dim 1 : vector<8x128xf32>, i32 -> vector<8x128xf32>
    %26 = arith.addf %24, %25 : vector<8x128xf32>
    %27 = math.tanh %26 : vector<8x128xf32>
    %28 = arith.mulf %18, %27 : vector<8x128xf32>
    %29 = vector.extract_strided_slice %5 {offsets = [8, 0], sizes = [8, 256], strides = [1, 1]} : vector<40x256xf32> to vector<8x256xf32>
    %30 = arith.truncf %28 : vector<8x128xf32> to vector<8x128xbf16>
    %cst_12 = arith.constant dense<0.000000e+00> : vector<8x256xf32>
    %31 = tpu.matmul %30, %6, %cst_12 {dimension_numbers = #tpu.dot_dimension_numbers<[1], [0], [0], [1], [0, 0, 1, 1], [], []>} : vector<8x128xbf16>, vector<128x256xbf16>, vector<8x256xf32> -> vector<8x256xf32>
    %32 = arith.addf %29, %31 : vector<8x256xf32>
    %33 = arith.negf %32 : vector<8x256xf32>
    %34 = math.exp %33 : vector<8x256xf32>
    %cst_13 = arith.constant 1.000000e+00 : f32
    %35 = vector.broadcast %cst_13 : f32 to vector<8x256xf32>
    %36 = arith.addf %35, %34 : vector<8x256xf32>
    %37 = arith.divf %35, %36 : vector<8x256xf32>
    %38 = vector.extract_strided_slice %37 {offsets = [0, 0], sizes = [8, 128], strides = [1, 1]} : vector<8x256xf32> to vector<8x128xf32>
    %39 = vector.extract_strided_slice %37 {offsets = [0, 128], sizes = [8, 128], strides = [1, 1]} : vector<8x256xf32> to vector<8x128xf32>
    %cst_14 = arith.constant 2.000000e+00 : f32
    %40 = vector.broadcast %cst_14 : f32 to vector<8x128xf32>
    %41 = arith.mulf %40, %39 : vector<8x128xf32>
    %cst_15 = arith.constant 1.000000e+00 : f32
    %42 = vector.broadcast %cst_15 : f32 to vector<8x128xf32>
    %43 = arith.subf %41, %42 : vector<8x128xf32>
    %44 = arith.select %9, %26, %43 : vector<8x128xi1>, vector<8x128xf32>
    %45 = arith.mulf %38, %44 : vector<8x128xf32>
    %c64_i32_16 = arith.constant 64 : i32
    %46 = tpu.dynamic_rotate %45 by %c64_i32_16 dim 1 : vector<8x128xf32>, i32 -> vector<8x128xf32>
    %47 = arith.addf %45, %46 : vector<8x128xf32>
    %48 = math.tanh %47 : vector<8x128xf32>
    %49 = arith.mulf %39, %48 : vector<8x128xf32>
    %50 = vector.extract_strided_slice %5 {offsets = [16, 0], sizes = [8, 256], strides = [1, 1]} : vector<40x256xf32> to vector<8x256xf32>
    %51 = arith.truncf %49 : vector<8x128xf32> to vector<8x128xbf16>
    %cst_17 = arith.constant dense<0.000000e+00> : vector<8x256xf32>
    %52 = tpu.matmul %51, %6, %cst_17 {dimension_numbers = #tpu.dot_dimension_numbers<[1], [0], [0], [1], [0, 0, 1, 1], [], []>} : vector<8x128xbf16>, vector<128x256xbf16>, vector<8x256xf32> -> vector<8x256xf32>
    %53 = arith.addf %50, %52 : vector<8x256xf32>
    %54 = arith.negf %53 : vector<8x256xf32>
    %55 = math.exp %54 : vector<8x256xf32>
    %cst_18 = arith.constant 1.000000e+00 : f32
    %56 = vector.broadcast %cst_18 : f32 to vector<8x256xf32>
    %57 = arith.addf %56, %55 : vector<8x256xf32>
    %58 = arith.divf %56, %57 : vector<8x256xf32>
    %59 = vector.extract_strided_slice %58 {offsets = [0, 0], sizes = [8, 128], strides = [1, 1]} : vector<8x256xf32> to vector<8x128xf32>
    %60 = vector.extract_strided_slice %58 {offsets = [0, 128], sizes = [8, 128], strides = [1, 1]} : vector<8x256xf32> to vector<8x128xf32>
    %cst_19 = arith.constant 2.000000e+00 : f32
    %61 = vector.broadcast %cst_19 : f32 to vector<8x128xf32>
    %62 = arith.mulf %61, %60 : vector<8x128xf32>
    %cst_20 = arith.constant 1.000000e+00 : f32
    %63 = vector.broadcast %cst_20 : f32 to vector<8x128xf32>
    %64 = arith.subf %62, %63 : vector<8x128xf32>
    %65 = arith.select %9, %47, %64 : vector<8x128xi1>, vector<8x128xf32>
    %66 = arith.mulf %59, %65 : vector<8x128xf32>
    %c64_i32_21 = arith.constant 64 : i32
    %67 = tpu.dynamic_rotate %66 by %c64_i32_21 dim 1 : vector<8x128xf32>, i32 -> vector<8x128xf32>
    %68 = arith.addf %66, %67 : vector<8x128xf32>
    %69 = math.tanh %68 : vector<8x128xf32>
    %70 = arith.mulf %60, %69 : vector<8x128xf32>
    %71 = vector.extract_strided_slice %5 {offsets = [24, 0], sizes = [8, 256], strides = [1, 1]} : vector<40x256xf32> to vector<8x256xf32>
    %72 = arith.truncf %70 : vector<8x128xf32> to vector<8x128xbf16>
    %cst_22 = arith.constant dense<0.000000e+00> : vector<8x256xf32>
    %73 = tpu.matmul %72, %6, %cst_22 {dimension_numbers = #tpu.dot_dimension_numbers<[1], [0], [0], [1], [0, 0, 1, 1], [], []>} : vector<8x128xbf16>, vector<128x256xbf16>, vector<8x256xf32> -> vector<8x256xf32>
    %74 = arith.addf %71, %73 : vector<8x256xf32>
    %75 = arith.negf %74 : vector<8x256xf32>
    %76 = math.exp %75 : vector<8x256xf32>
    %cst_23 = arith.constant 1.000000e+00 : f32
    %77 = vector.broadcast %cst_23 : f32 to vector<8x256xf32>
    %78 = arith.addf %77, %76 : vector<8x256xf32>
    %79 = arith.divf %77, %78 : vector<8x256xf32>
    %80 = vector.extract_strided_slice %79 {offsets = [0, 0], sizes = [8, 128], strides = [1, 1]} : vector<8x256xf32> to vector<8x128xf32>
    %81 = vector.extract_strided_slice %79 {offsets = [0, 128], sizes = [8, 128], strides = [1, 1]} : vector<8x256xf32> to vector<8x128xf32>
    %cst_24 = arith.constant 2.000000e+00 : f32
    %82 = vector.broadcast %cst_24 : f32 to vector<8x128xf32>
    %83 = arith.mulf %82, %81 : vector<8x128xf32>
    %cst_25 = arith.constant 1.000000e+00 : f32
    %84 = vector.broadcast %cst_25 : f32 to vector<8x128xf32>
    %85 = arith.subf %83, %84 : vector<8x128xf32>
    %86 = arith.select %9, %68, %85 : vector<8x128xi1>, vector<8x128xf32>
    %87 = arith.mulf %80, %86 : vector<8x128xf32>
    %c64_i32_26 = arith.constant 64 : i32
    %88 = tpu.dynamic_rotate %87 by %c64_i32_26 dim 1 : vector<8x128xf32>, i32 -> vector<8x128xf32>
    %89 = arith.addf %87, %88 : vector<8x128xf32>
    %90 = math.tanh %89 : vector<8x128xf32>
    %91 = arith.mulf %81, %90 : vector<8x128xf32>
    %92 = vector.extract_strided_slice %5 {offsets = [32, 0], sizes = [8, 256], strides = [1, 1]} : vector<40x256xf32> to vector<8x256xf32>
    %93 = arith.truncf %91 : vector<8x128xf32> to vector<8x128xbf16>
    %cst_27 = arith.constant dense<0.000000e+00> : vector<8x256xf32>
    %94 = tpu.matmul %93, %6, %cst_27 {dimension_numbers = #tpu.dot_dimension_numbers<[1], [0], [0], [1], [0, 0, 1, 1], [], []>} : vector<8x128xbf16>, vector<128x256xbf16>, vector<8x256xf32> -> vector<8x256xf32>
    %95 = arith.addf %92, %94 : vector<8x256xf32>
    %96 = arith.negf %95 : vector<8x256xf32>
    %97 = math.exp %96 : vector<8x256xf32>
    %cst_28 = arith.constant 1.000000e+00 : f32
    %98 = vector.broadcast %cst_28 : f32 to vector<8x256xf32>
    %99 = arith.addf %98, %97 : vector<8x256xf32>
    %100 = arith.divf %98, %99 : vector<8x256xf32>
    %101 = vector.extract_strided_slice %100 {offsets = [0, 0], sizes = [8, 128], strides = [1, 1]} : vector<8x256xf32> to vector<8x128xf32>
    %102 = vector.extract_strided_slice %100 {offsets = [0, 128], sizes = [8, 128], strides = [1, 1]} : vector<8x256xf32> to vector<8x128xf32>
    %cst_29 = arith.constant 2.000000e+00 : f32
    %103 = vector.broadcast %cst_29 : f32 to vector<8x128xf32>
    %104 = arith.mulf %103, %102 : vector<8x128xf32>
    %cst_30 = arith.constant 1.000000e+00 : f32
    %105 = vector.broadcast %cst_30 : f32 to vector<8x128xf32>
    %106 = arith.subf %104, %105 : vector<8x128xf32>
    %107 = arith.select %9, %89, %106 : vector<8x128xi1>, vector<8x128xf32>
    %108 = arith.mulf %101, %107 : vector<8x128xf32>
    %c64_i32_31 = arith.constant 64 : i32
    %109 = tpu.dynamic_rotate %108 by %c64_i32_31 dim 1 : vector<8x128xf32>, i32 -> vector<8x128xf32>
    %110 = arith.addf %108, %109 : vector<8x128xf32>
    %111 = math.tanh %110 : vector<8x128xf32>
    %112 = arith.mulf %102, %111 : vector<8x128xf32>
    %c0_32 = arith.constant 0 : index
    %c0_33 = arith.constant 0 : index
    %113 = vector.load %arg4[%c0_32, %c0_33] : memref<128x128xf32, #tpu.memory_space<vmem>>, vector<128x128xf32>
    %cst_34 = arith.constant dense<0.000000e+00> : vector<8x128xf32>
    %114 = tpu.matmul %112, %113, %cst_34 {dimension_numbers = #tpu.dot_dimension_numbers<[1], [0], [0], [1], [0, 0, 1, 1], [], []>} : vector<8x128xf32>, vector<128x128xf32>, vector<8x128xf32> -> vector<8x128xf32>
    %c0_35 = arith.constant 0 : index
    %c0_36 = arith.constant 0 : index
    %115 = vector.load %arg5[%c0_35, %c0_36] : memref<1x128xf32, #tpu.memory_space<vmem>>, vector<1x128xf32>
    %116 = vector.broadcast %115 : vector<1x128xf32> to vector<8x128xf32>
    %117 = arith.addf %114, %116 : vector<8x128xf32>
    %c0_37 = arith.constant 0 : index
    %c0_38 = arith.constant 0 : index
    %118 = vector.load %arg6[%c0_37, %c0_38] : memref<8x128xf32, #tpu.memory_space<vmem>>, vector<8x128xf32>
    tpu.vector_store %arg6[%c0_37, %c0_38], %117 {strides = array<i32>} : memref<8x128xf32, #tpu.memory_space<vmem>>, vector<8x128xf32>,
    return
  }
}

</mosaic_0001>

<llo_original>
// kernel: tpu_custom_call.1
$region0: #{tpu_custom_call.1}
  #allocation0 [shape = 'u32[]', space=smem, size = 0x4, offset = 0x4, fixed_abs, tag = 'smem constant byte address 0x4 - core index']
  #allocation1 [shape = 'u32[72,128]{1,0:T(1,128)}', space=vmem, size = 0x9000, scoped, tag = 'internal scratch']
  %s0 = inlined_call_operand.vmem [shape: f32[40,30], index: 0, kind: input, shape index: {}]
  %s1 = inlined_call_operand.vmem [shape: f32[30,256], index: 1, kind: input, shape index: {}]
  %s2 = inlined_call_operand.hbm [shape: bf16[128,256], index: 2, kind: input, shape index: {}]
  %s3 = inlined_call_operand.vmem [shape: f32[1,256], index: 3, kind: input, shape index: {}]
  %s4 = inlined_call_operand.hbm [shape: f32[128,128], index: 4, kind: input, shape index: {}]
  %s5 = inlined_call_operand.vmem [shape: f32[1,128], index: 5, kind: input, shape index: {}]
  %s6 = inlined_call_operand.hbm [shape: f32[8,128], index: 6, kind: output, shape index: {}]
  %s7 = sld [smem:[#allocation0]]
  $region42: #{tpu_custom_call.1} parent=0
    _
  %s9 = ssub.s32 1, %s7
  %s10 = scalar_select 0, %s9, %s7
  $region1: #{tpu_custom_call.1} parent=0
    #allocation2 [shape = 'u8[65536]{0}', space=vmem, size = 0x10000, scoped, tag = 'input window, operand 2, single buffered']
    #allocation3 [shape = 's32[1]{0}', space=sflag, size = 0x4, scoped, tag = 'scoped memory for tpu_custom_call.1']
    #allocation4 [shape = 's32[1]{0}', space=sflag, size = 0x4, scoped, tag = 'scoped memory for tpu_custom_call.1']
    #allocation5 [shape = 'u8[65536]{0}', space=vmem, size = 0x10000, scoped, tag = 'input window, operand 4, single buffered']
    #allocation6 [shape = 's32[1]{0}', space=sflag, size = 0x4, scoped, tag = 'scoped memory for tpu_custom_call.1']
    #allocation7 [shape = 'u8[4096]{0}', space=vmem, size = 0x1000, scoped, tag = 'output window, operand 0, single buffered']
    %11 = vsyncpa [#allocation3], 0
    %12 = vsyncpa [#allocation6], 0
    %13 = vsyncpa [#allocation4], 0
    // Predicated region
    $region2: #{tpu_custom_call.1} parent=1 // pred_check
      _
    $region3: #{tpu_custom_call.1} parent=1 // pred_check_branch
      %15 = sbr.rel (0) target = $region5
    $region4: #{tpu_custom_call.1} parent=1 // pred_region
      _
    $region5: #{tpu_custom_call.1} parent=1 // pred_fallthru
      _
    // Predicated region
    $region6: #{tpu_custom_call.1} parent=1 // pred_check
      _
    $region7: #{tpu_custom_call.1} parent=1 // pred_check_branch
      %17 = sbr.rel (0) target = $region9
    $region8: #{tpu_custom_call.1} parent=1 // pred_region
      _
    $region9: #{tpu_custom_call.1} parent=1 // pred_fallthru
      _
    // Predicated region
    $region10: #{tpu_custom_call.1} parent=1 // pred_check
      _
    $region11: #{tpu_custom_call.1} parent=1 // pred_check_branch
      %19 = sbr.rel (0) target = $region13
    $region12: #{tpu_custom_call.1} parent=1 // pred_region
      %21 = vsyncadd [#allocation3], 0
      %s22 = sshll.u32 %s2, 4
      %s23 = int_to_ptr.hbm [resolvable:$true] %s22
      %s24 = sshll.u32 [#allocation2], 4
      %s25 = int_to_ptr.vmem [resolvable:$true] %s24
      %30 = dma.hbm_to_vmem [thread:$0]  %s23, 2048, %s25, [#allocation3], 128, 128, 8
    $region13: #{tpu_custom_call.1} parent=1 // pred_fallthru
      _
    // Predicated region
    $region14: #{tpu_custom_call.1} parent=1 // pred_check
      _
    $region15: #{tpu_custom_call.1} parent=1 // pred_check_branch
      %32 = sbr.rel (0) target = $region17
    $region16: #{tpu_custom_call.1} parent=1 // pred_region
      _
    $region17: #{tpu_custom_call.1} parent=1 // pred_fallthru
      _
    // Predicated region
    $region18: #{tpu_custom_call.1} parent=1 // pred_check
      _
    $region19: #{tpu_custom_call.1} parent=1 // pred_check_branch
      %34 = sbr.rel (0) target = $region21
    $region20: #{tpu_custom_call.1} parent=1 // pred_region
      %36 = vsyncadd [#allocation6], 0
      %s37 = sshll.u32 %s4, 4
      %s38 = int_to_ptr.hbm [resolvable:$true] %s37
      %s39 = sshll.u32 [#allocation5], 4
      %s40 = int_to_ptr.vmem [resolvable:$true] %s39
      %45 = dma.hbm_to_vmem [thread:$0]  %s38, 2048, %s40, [#allocation6], 128, 128, 8
    $region21: #{tpu_custom_call.1} parent=1 // pred_fallthru
      _
    // Predicated region
    $region22: #{tpu_custom_call.1} parent=1 // pred_check
      _
    $region23: #{tpu_custom_call.1} parent=1 // pred_check_branch
      %47 = sbr.rel (0) target = $region25
    $region24: #{tpu_custom_call.1} parent=1 // pred_region
      _
    $region25: #{tpu_custom_call.1} parent=1 // pred_fallthru
      _
    // Predicated region
    $region26: #{tpu_custom_call.1} parent=1 // pred_check
      _
    $region27: #{tpu_custom_call.1} parent=1 // pred_check_branch
      %49 = sbr.rel (0) target = $region29
    $region28: #{tpu_custom_call.1} parent=1 // pred_region
      %51 = dma.done [#allocation3], 2048
    $region29: #{tpu_custom_call.1} parent=1 // pred_fallthru
      _
    // Predicated region
    $region30: #{tpu_custom_call.1} parent=1 // pred_check
      _
    $region31: #{tpu_custom_call.1} parent=1 // pred_check_branch
      %53 = sbr.rel (0) target = $region33
    $region32: #{tpu_custom_call.1} parent=1 // pred_region
      %55 = dma.done [#allocation6], 2048
    $region33: #{tpu_custom_call.1} parent=1 // pred_fallthru
      _
    %v56 = vld [vmem:[%s0] sm:$0xff]
    %v57 = vld [vmem:[%s0 + $0x8] sm:$0xff]
    %v58 = vld [vmem:[%s0 + $0x10] sm:$0xff]
    %v59 = vld [vmem:[%s0 + $0x18] sm:$0xff]
    %v60 = vld [vmem:[%s0 + $0x20] sm:$0xff]
    %v61 = vld [vmem:[%s1] sm:$0xff]
    %v62 = vld [vmem:[%s1 + $0x8] sm:$0xff]
    %v63 = vld [vmem:[%s1 + $0x10] sm:$0xff]
    %v64 = vld [vmem:[%s1 + $0x18] sm:$0xff]
    %v65 = vld [vmem:[%s1 + $0x20] sm:$0xff]
    %v66 = vld [vmem:[%s1 + $0x28] sm:$0xff]
    %v67 = vld [vmem:[%s1 + $0x30] sm:$0x3f]
    %v68 = vld [vmem:[%s1 + $0x38] sm:$0x3f]
    %v69 = vld [vmem:[%s3] sm:$0x3]
    %v71 = vperm.slane %v69, 0
    %v72 = vperm.slane %v69, 1
    %vm75 = vcmask 244736
    %v77 = vsel %vm75, %v56, 0
    %v80 = vsel %vm75, %v57, 0
    %v83 = vsel %vm75, %v58, 0
    %v86 = vsel %vm75, %v59, 0
    %v89 = vsel %vm75, %v60, 0
    %vm91 = vcmask 1045504
    %v93 = vsel %vm91, %v67, 0
    %v96 = vsel %vm91, %v68, 0
    %98 = vmatpush.msra.mxu0 0.0
    %99 = vmatpush.msra.mxu0 0.0
    %100 = vmatpush.msra.mxu0 0.0
    %101 = vmatpush.msra.mxu0 0.0
    %102 = vmatpush.msra.mxu0 0.0
    %103 = vmatpush.msra.mxu0 0.0
    %104 = vmatpush.msra.mxu0 0.0
    %105 = vmatpush.msra.mxu0 0.0
    %106 = vmatpush.msra.mxu0 0.0
    %107 = vmatpush.msra.mxu0 0.0
    %108 = vmatpush.msra.mxu0 0.0
    %109 = vmatpush.msra.mxu0 0.0
    %110 = vmatpush.msra.mxu0 %v93
    %111 = vmatpush.msra.mxu0 %v65
    %112 = vmatpush.msra.mxu0 %v63
    %113 = vmatpush.msra.mxu0 %v61
    %114 = vmatmul.f32.gmra.mxu0 %v77
    %v115 = vpop.f32.mrf.mxu0
    %v116 = vadd.f32 %v71, %v115
    %117 = vmatmul.f32.gmra.mxu0 %v80
    %v118 = vpop.f32.mrf.mxu0
    %v119 = vadd.f32 %v71, %v118
    %120 = vmatmul.f32.gmra.mxu0 %v83
    %v121 = vpop.f32.mrf.mxu0
    %v122 = vadd.f32 %v71, %v121
    %123 = vmatmul.f32.gmra.mxu0 %v86
    %v124 = vpop.f32.mrf.mxu0
    %v125 = vadd.f32 %v71, %v124
    %126 = vmatmul.f32.gmra.mxu0 %v89
    %v127 = vpop.f32.mrf.mxu0
    %v128 = vadd.f32 %v71, %v127
    %129 = vdwg.mxu0
    %130 = vmatpush.msra.mxu0 0.0
    %131 = vmatpush.msra.mxu0 0.0
    %132 = vmatpush.msra.mxu0 0.0
    %133 = vmatpush.msra.mxu0 0.0
    %134 = vmatpush.msra.mxu0 0.0
    %135 = vmatpush.msra.mxu0 0.0
    %136 = vmatpush.msra.mxu0 0.0
    %137 = vmatpush.msra.mxu0 0.0
    %138 = vmatpush.msra.mxu0 0.0
    %139 = vmatpush.msra.mxu0 0.0
    %140 = vmatpush.msra.mxu0 0.0
    %141 = vmatpush.msra.mxu0 0.0
    %142 = vmatpush.msra.mxu0 %v96
    %143 = vmatpush.msra.mxu0 %v66
    %144 = vmatpush.msra.mxu0 %v64
    %145 = vmatpush.msra.mxu0 %v62
    %146 = vmatmul.f32.gmra.mxu0 %v77
    %v147 = vpop.f32.mrf.mxu0
    %v148 = vadd.f32 %v72, %v147
    %149 = vmatmul.f32.gmra.mxu0 %v80
    %v150 = vpop.f32.mrf.mxu0
    %v151 = vadd.f32 %v72, %v150
    %152 = vmatmul.f32.gmra.mxu0 %v83
    %v153 = vpop.f32.mrf.mxu0
    %v154 = vadd.f32 %v72, %v153
    %155 = vmatmul.f32.gmra.mxu0 %v86
    %v156 = vpop.f32.mrf.mxu0
    %v157 = vadd.f32 %v72, %v156
    %158 = vmatmul.f32.gmra.mxu0 %v89
    %v159 = vpop.f32.mrf.mxu0
    %v160 = vadd.f32 %v72, %v159
    %161 = vdwg.mxu0
    %v162 = vld [vmem:[#allocation2] sm:$0xff]
    %v163 = vld [vmem:[#allocation2 + $0x8] sm:$0xff]
    %v164 = vld [vmem:[#allocation2 + $0x10] sm:$0xff]
    %v165 = vld [vmem:[#allocation2 + $0x18] sm:$0xff]
    %v166 = vld [vmem:[#allocation2 + $0x20] sm:$0xff]
    %v167 = vld [vmem:[#allocation2 + $0x28] sm:$0xff]
    %v168 = vld [vmem:[#allocation2 + $0x30] sm:$0xff]
    %v169 = vld [vmem:[#allocation2 + $0x38] sm:$0xff]
    %v170 = vld [vmem:[#allocation2 + $0x40] sm:$0xff]
    %v171 = vld [vmem:[#allocation2 + $0x48] sm:$0xff]
    %v172 = vld [vmem:[#allocation2 + $0x50] sm:$0xff]
    %v173 = vld [vmem:[#allocation2 + $0x58] sm:$0xff]
    %v174 = vld [vmem:[#allocation2 + $0x60] sm:$0xff]
    %v175 = vld [vmem:[#allocation2 + $0x68] sm:$0xff]
    %v176 = vld [vmem:[#allocation2 + $0x70] sm:$0xff]
    %v177 = vld [vmem:[#allocation2 + $0x78] sm:$0xff]
    %v178 = vlaneseq
    %v179 = vand.u32 %v178, 127
    %vm180 = vcmp.lt.s32.totalorder %v179, 64
    %v181 = vxor.u32 %v116, 2147483648
    %v182 = vxor.u32 %v148, 2147483648
    %v183 = vmul.f32 %v181, 1.442695
    %v184 = vpow.pop %v183
    %v185 = vmul.f32 %v182, 1.442695
    %v186 = vpow.pop %v185
    %v187 = vadd.f32 %v184, 1.0
    %v188 = vadd.f32 %v186, 1.0
    %v189 = vrcp.pop %v187
    %v190 = vmul.f32 %v187, %v189
    %v191 = vsub.f32 1.0, %v190
    %v192 = vmul.f32 %v189, %v191
    %v193 = vadd.f32 %v189, %v192
    %vm194 = vweird.f32 %v187
    %vm195 = vweird.f32 %v189
    %vm196 = vmor %vm194, %vm195
    %v197 = vsel %vm196, %v189, %v193
    %v198 = vand.u32 2147483647, %v187
    %vm199 = vcmp.eq.f32.partialorder %v198, 8.507059e+37
    %v200 = vand.u32 %v187, 2147483648
    %v201 = vor.u32 1.1754944e-38, %v200
    %v202 = vsel %vm199, %v201, %v197
    %v203 = vmul.f32 1.0, %v202
    %v204 = vrcp.pop %v188
    %v205 = vmul.f32 %v188, %v204
    %v206 = vsub.f32 1.0, %v205
    %v207 = vmul.f32 %v204, %v206
    %v208 = vadd.f32 %v204, %v207
    %vm209 = vweird.f32 %v188
    %vm210 = vweird.f32 %v204
    %vm211 = vmor %vm209, %vm210
    %v212 = vsel %vm211, %v204, %v208
    %v213 = vand.u32 2147483647, %v188
    %vm214 = vcmp.eq.f32.partialorder %v213, 8.507059e+37
    %v215 = vand.u32 %v188, 2147483648
    %v216 = vor.u32 1.1754944e-38, %v215
    %v217 = vsel %vm214, %v216, %v212
    %v218 = vmul.f32 1.0, %v217
    %v219 = vmul.f32 %v218, 2.0
    %v220 = vsub.f32 %v219, 1.0
    %v221 = vsel %vm180, 0.0, %v220
    %v222 = vmul.f32 %v203, %v221
    %223 = vrot.lane.b32.xlu0 %v222, 64
    %v224 = vpop.permute.xlu0 %223
    %v225 = vadd.f32 %v222, %v224
    %v226 = vtanh.pop %v225
    %v227 = vmul.f32 %v218, %v226
    %v228 = vpack.c.bf16 %v227, %v227
    %v245 = vunpack.c.l.b16 %v162
    %v246 = vunpack.c.h.b16 %v162
    %v247 = vunpack.c.l.b16 %v163
    %v248 = vunpack.c.h.b16 %v163
    %v249 = vunpack.c.l.b16 %v164
    %v250 = vunpack.c.h.b16 %v164
    %v251 = vunpack.c.l.b16 %v165
    %v252 = vunpack.c.h.b16 %v165
    %v253 = vunpack.c.l.b16 %v166
    %v254 = vunpack.c.h.b16 %v166
    %v255 = vunpack.c.l.b16 %v167
    %v256 = vunpack.c.h.b16 %v167
    %v257 = vunpack.c.l.b16 %v168
    %v258 = vunpack.c.h.b16 %v168
    %v259 = vunpack.c.l.b16 %v169
    %v260 = vunpack.c.h.b16 %v169
    %v261 = vunpack.c.l.b16 %v170
    %v262 = vunpack.c.h.b16 %v170
    %v263 = vunpack.c.l.b16 %v171
    %v264 = vunpack.c.h.b16 %v171
    %v265 = vunpack.c.l.b16 %v172
    %v266 = vunpack.c.h.b16 %v172
    %v267 = vunpack.c.l.b16 %v173
    %v268 = vunpack.c.h.b16 %v173
    %v269 = vunpack.c.l.b16 %v174
    %v270 = vunpack.c.h.b16 %v174
    %v271 = vunpack.c.l.b16 %v175
    %v272 = vunpack.c.h.b16 %v175
    %v273 = vunpack.c.l.b16 %v176
    %v274 = vunpack.c.h.b16 %v176
    %v275 = vunpack.c.l.b16 %v177
    %v276 = vunpack.c.h.b16 %v177
    %v277 = vpack.c.b16 %v247, %v245
    %v278 = vpack.c.b16 %v248, %v246
    %v279 = vpack.c.b16 %v251, %v249
    %v280 = vpack.c.b16 %v252, %v250
    %v281 = vpack.c.b16 %v255, %v253
    %v282 = vpack.c.b16 %v256, %v254
    %v283 = vpack.c.b16 %v259, %v257
    %v284 = vpack.c.b16 %v260, %v258
    %v285 = vpack.c.b16 %v263, %v261
    %v286 = vpack.c.b16 %v264, %v262
    %v287 = vpack.c.b16 %v267, %v265
    %v288 = vpack.c.b16 %v268, %v266
    %v289 = vpack.c.b16 %v271, %v269
    %v290 = vpack.c.b16 %v272, %v270
    %v291 = vpack.c.b16 %v275, %v273
    %v292 = vpack.c.b16 %v276, %v274
    %309 = vmatpush.bf16.msra.mxu0 %v291
    %310 = vmatpush.bf16.msra.mxu0 %v289
    %311 = vmatpush.bf16.msra.mxu0 %v287
    %312 = vmatpush.bf16.msra.mxu0 %v285
    %313 = vmatpush.bf16.msra.mxu0 %v283
    %314 = vmatpush.bf16.msra.mxu0 %v281
    %315 = vmatpush.bf16.msra.mxu0 %v279
    %316 = vmatpush.bf16.msra.mxu0 %v277
    %317 = vmatmul.bf16.gmra.mxu0 %v228
    %v318 = vpop.f32.mrf.mxu0
    %v319 = vadd.f32 0.0, %v318
    %v320 = vpop.f32.mrf.mxu0
    %321 = vdwg.mxu0
    %322 = vmatpush.bf16.msra.mxu0 %v292
    %323 = vmatpush.bf16.msra.mxu0 %v290
    %324 = vmatpush.bf16.msra.mxu0 %v288
    %325 = vmatpush.bf16.msra.mxu0 %v286
    %326 = vmatpush.bf16.msra.mxu0 %v284
    %327 = vmatpush.bf16.msra.mxu0 %v282
    %328 = vmatpush.bf16.msra.mxu0 %v280
    %329 = vmatpush.bf16.msra.mxu0 %v278
    %330 = vmatmul.bf16.gmra.mxu0 %v228
    %v331 = vpop.f32.mrf.mxu0
    %v332 = vadd.f32 0.0, %v331
    %v333 = vpop.f32.mrf.mxu0
    %334 = vdwg.mxu0
    %v335 = vadd.f32 %v119, %v319
    %v336 = vadd.f32 %v151, %v332
    %v337 = vxor.u32 %v335, 2147483648
    %v338 = vxor.u32 %v336, 2147483648
    %v339 = vmul.f32 %v337, 1.442695
    %v340 = vpow.pop %v339
    %v341 = vmul.f32 %v338, 1.442695
    %v342 = vpow.pop %v341
    %v343 = vadd.f32 %v340, 1.0
    %v344 = vadd.f32 %v342, 1.0
    %v345 = vrcp.pop %v343
    %v346 = vmul.f32 %v343, %v345
    %v347 = vsub.f32 1.0, %v346
    %v348 = vmul.f32 %v345, %v347
    %v349 = vadd.f32 %v345, %v348
    %vm350 = vweird.f32 %v343
    %vm351 = vweird.f32 %v345
    %vm352 = vmor %vm350, %vm351
    %v353 = vsel %vm352, %v345, %v349
    %v354 = vand.u32 2147483647, %v343
    %vm355 = vcmp.eq.f32.partialorder %v354, 8.507059e+37
    %v356 = vand.u32 %v343, 2147483648
    %v357 = vor.u32 1.1754944e-38, %v356
    %v358 = vsel %vm355, %v357, %v353
    %v359 = vmul.f32 1.0, %v358
    %v360 = vrcp.pop %v344
    %v361 = vmul.f32 %v344, %v360
    %v362 = vsub.f32 1.0, %v361
    %v363 = vmul.f32 %v360, %v362
    %v364 = vadd.f32 %v360, %v363
    %vm365 = vweird.f32 %v344
    %vm366 = vweird.f32 %v360
    %vm367 = vmor %vm365, %vm366
    %v368 = vsel %vm367, %v360, %v364
    %v369 = vand.u32 2147483647, %v344
    %vm370 = vcmp.eq.f32.partialorder %v369, 8.507059e+37
    %v371 = vand.u32 %v344, 2147483648
    %v372 = vor.u32 1.1754944e-38, %v371
    %v373 = vsel %vm370, %v372, %v368
    %v374 = vmul.f32 1.0, %v373
    %v375 = vmul.f32 %v374, 2.0
    %v376 = vsub.f32 %v375, 1.0
    %v377 = vsel %vm180, %v225, %v376
    %v378 = vmul.f32 %v359, %v377
    %379 = vrot.lane.b32.xlu0 %v378, 64
    %v380 = vpop.permute.xlu0 %379
    %v381 = vadd.f32 %v378, %v380
    %v382 = vtanh.pop %v381
    %v383 = vmul.f32 %v374, %v382
    %v384 = vpack.c.bf16 %v383, %v383
    %385 = vmatpush.bf16.msra.mxu0 %v291
    %386 = vmatpush.bf16.msra.mxu0 %v289
    %387 = vmatpush.bf16.msra.mxu0 %v287
    %388 = vmatpush.bf16.msra.mxu0 %v285
    %389 = vmatpush.bf16.msra.mxu0 %v283
    %390 = vmatpush.bf16.msra.mxu0 %v281
    %391 = vmatpush.bf16.msra.mxu0 %v279
    %392 = vmatpush.bf16.msra.mxu0 %v277
    %393 = vmatmul.bf16.gmra.mxu0 %v384
    %v394 = vpop.f32.mrf.mxu0
    %v395 = vadd.f32 0.0, %v394
    %v396 = vpop.f32.mrf.mxu0
    %397 = vdwg.mxu0
    %398 = vmatpush.bf16.msra.mxu0 %v292
    %399 = vmatpush.bf16.msra.mxu0 %v290
    %400 = vmatpush.bf16.msra.mxu0 %v288
    %401 = vmatpush.bf16.msra.mxu0 %v286
    %402 = vmatpush.bf16.msra.mxu0 %v284
    %403 = vmatpush.bf16.msra.mxu0 %v282
    %404 = vmatpush.bf16.msra.mxu0 %v280
    %405 = vmatpush.bf16.msra.mxu0 %v278
    %406 = vmatmul.bf16.gmra.mxu0 %v384
    %v407 = vpop.f32.mrf.mxu0
    %v408 = vadd.f32 0.0, %v407
    %v409 = vpop.f32.mrf.mxu0
    %410 = vdwg.mxu0
    %v411 = vadd.f32 %v122, %v395
    %v412 = vadd.f32 %v154, %v408
    %v413 = vxor.u32 %v411, 2147483648
    %v414 = vxor.u32 %v412, 2147483648
    %v415 = vmul.f32 %v413, 1.442695
    %v416 = vpow.pop %v415
    %v417 = vmul.f32 %v414, 1.442695
    %v418 = vpow.pop %v417
    %v419 = vadd.f32 %v416, 1.0
    %v420 = vadd.f32 %v418, 1.0
    %v421 = vrcp.pop %v419
    %v422 = vmul.f32 %v419, %v421
    %v423 = vsub.f32 1.0, %v422
    %v424 = vmul.f32 %v421, %v423
    %v425 = vadd.f32 %v421, %v424
    %vm426 = vweird.f32 %v419
    %vm427 = vweird.f32 %v421
    %vm428 = vmor %vm426, %vm427
    %v429 = vsel %vm428, %v421, %v425
    %v430 = vand.u32 2147483647, %v419
    %vm431 = vcmp.eq.f32.partialorder %v430, 8.507059e+37
    %v432 = vand.u32 %v419, 2147483648
    %v433 = vor.u32 1.1754944e-38, %v432
    %v434 = vsel %vm431, %v433, %v429
    %v435 = vmul.f32 1.0, %v434
    %v436 = vrcp.pop %v420
    %v437 = vmul.f32 %v420, %v436
    %v438 = vsub.f32 1.0, %v437
    %v439 = vmul.f32 %v436, %v438
    %v440 = vadd.f32 %v436, %v439
    %vm441 = vweird.f32 %v420
    %vm442 = vweird.f32 %v436
    %vm443 = vmor %vm441, %vm442
    %v444 = vsel %vm443, %v436, %v440
    %v445 = vand.u32 2147483647, %v420
    %vm446 = vcmp.eq.f32.partialorder %v445, 8.507059e+37
    %v447 = vand.u32 %v420, 2147483648
    %v448 = vor.u32 1.1754944e-38, %v447
    %v449 = vsel %vm446, %v448, %v444
    %v450 = vmul.f32 1.0, %v449
    %v451 = vmul.f32 %v450, 2.0
    %v452 = vsub.f32 %v451, 1.0
    %v453 = vsel %vm180, %v381, %v452
    %v454 = vmul.f32 %v435, %v453
    %455 = vrot.lane.b32.xlu0 %v454, 64
    %v456 = vpop.permute.xlu0 %455
    %v457 = vadd.f32 %v454, %v456
    %v458 = vtanh.pop %v457
    %v459 = vmul.f32 %v450, %v458
    %v460 = vpack.c.bf16 %v459, %v459
    %461 = vmatpush.bf16.msra.mxu0 %v291
    %462 = vmatpush.bf16.msra.mxu0 %v289
    %463 = vmatpush.bf16.msra.mxu0 %v287
    %464 = vmatpush.bf16.msra.mxu0 %v285
    %465 = vmatpush.bf16.msra.mxu0 %v283
    %466 = vmatpush.bf16.msra.mxu0 %v281
    %467 = vmatpush.bf16.msra.mxu0 %v279
    %468 = vmatpush.bf16.msra.mxu0 %v277
    %469 = vmatmul.bf16.gmra.mxu0 %v460
    %v470 = vpop.f32.mrf.mxu0
    %v471 = vadd.f32 0.0, %v470
    %v472 = vpop.f32.mrf.mxu0
    %473 = vdwg.mxu0
    %474 = vmatpush.bf16.msra.mxu0 %v292
    %475 = vmatpush.bf16.msra.mxu0 %v290
    %476 = vmatpush.bf16.msra.mxu0 %v288
    %477 = vmatpush.bf16.msra.mxu0 %v286
    %478 = vmatpush.bf16.msra.mxu0 %v284
    %479 = vmatpush.bf16.msra.mxu0 %v282
    %480 = vmatpush.bf16.msra.mxu0 %v280
    %481 = vmatpush.bf16.msra.mxu0 %v278
    %482 = vmatmul.bf16.gmra.mxu0 %v460
    %v483 = vpop.f32.mrf.mxu0
    %v484 = vadd.f32 0.0, %v483
    %v485 = vpop.f32.mrf.mxu0
    %486 = vdwg.mxu0
    %v487 = vadd.f32 %v125, %v471
    %v488 = vadd.f32 %v157, %v484
    %v489 = vxor.u32 %v487, 2147483648
    %v490 = vxor.u32 %v488, 2147483648
    %v491 = vmul.f32 %v489, 1.442695
    %v492 = vpow.pop %v491
    %v493 = vmul.f32 %v490, 1.442695
    %v494 = vpow.pop %v493
    %v495 = vadd.f32 %v492, 1.0
    %v496 = vadd.f32 %v494, 1.0
    %v497 = vrcp.pop %v495
    %v498 = vmul.f32 %v495, %v497
    %v499 = vsub.f32 1.0, %v498
    %v500 = vmul.f32 %v497, %v499
    %v501 = vadd.f32 %v497, %v500
    %vm502 = vweird.f32 %v495
    %vm503 = vweird.f32 %v497
    %vm504 = vmor %vm502, %vm503
    %v505 = vsel %vm504, %v497, %v501
    %v506 = vand.u32 2147483647, %v495
    %vm507 = vcmp.eq.f32.partialorder %v506, 8.507059e+37
    %v508 = vand.u32 %v495, 2147483648
    %v509 = vor.u32 1.1754944e-38, %v508
    %v510 = vsel %vm507, %v509, %v505
    %v511 = vmul.f32 1.0, %v510
    %v512 = vrcp.pop %v496
    %v513 = vmul.f32 %v496, %v512
    %v514 = vsub.f32 1.0, %v513
    %v515 = vmul.f32 %v512, %v514
    %v516 = vadd.f32 %v512, %v515
    %vm517 = vweird.f32 %v496
    %vm518 = vweird.f32 %v512
    %vm519 = vmor %vm517, %vm518
    %v520 = vsel %vm519, %v512, %v516
    %v521 = vand.u32 2147483647, %v496
    %vm522 = vcmp.eq.f32.partialorder %v521, 8.507059e+37
    %v523 = vand.u32 %v496, 2147483648
    %v524 = vor.u32 1.1754944e-38, %v523
    %v525 = vsel %vm522, %v524, %v520
    %v526 = vmul.f32 1.0, %v525
    %v527 = vmul.f32 %v526, 2.0
    %v528 = vsub.f32 %v527, 1.0
    %v529 = vsel %vm180, %v457, %v528
    %v530 = vmul.f32 %v511, %v529
    %531 = vrot.lane.b32.xlu0 %v530, 64
    %v532 = vpop.permute.xlu0 %531
    %v533 = vadd.f32 %v530, %v532
    %v534 = vtanh.pop %v533
    %v535 = vmul.f32 %v526, %v534
    %v536 = vpack.c.bf16 %v535, %v535
    %537 = vmatpush.bf16.msra.mxu0 %v291
    %538 = vmatpush.bf16.msra.mxu0 %v289
    %539 = vmatpush.bf16.msra.mxu0 %v287
    %540 = vmatpush.bf16.msra.mxu0 %v285
    %541 = vmatpush.bf16.msra.mxu0 %v283
    %542 = vmatpush.bf16.msra.mxu0 %v281
    %543 = vmatpush.bf16.msra.mxu0 %v279
    %544 = vmatpush.bf16.msra.mxu0 %v277
    %545 = vmatmul.bf16.gmra.mxu0 %v536
    %v546 = vpop.f32.mrf.mxu0
    %v547 = vadd.f32 0.0, %v546
    %v548 = vpop.f32.mrf.mxu0
    %549 = vdwg.mxu0
    %550 = vmatpush.bf16.msra.mxu0 %v292
    %551 = vmatpush.bf16.msra.mxu0 %v290
    %552 = vmatpush.bf16.msra.mxu0 %v288
    %553 = vmatpush.bf16.msra.mxu0 %v286
    %554 = vmatpush.bf16.msra.mxu0 %v284
    %555 = vmatpush.bf16.msra.mxu0 %v282
    %556 = vmatpush.bf16.msra.mxu0 %v280
    %557 = vmatpush.bf16.msra.mxu0 %v278
    %558 = vmatmul.bf16.gmra.mxu0 %v536
    %v559 = vpop.f32.mrf.mxu0
    %v560 = vadd.f32 0.0, %v559
    %v561 = vpop.f32.mrf.mxu0
    %562 = vdwg.mxu0
    %v563 = vadd.f32 %v128, %v547
    %v564 = vadd.f32 %v160, %v560
    %v565 = vxor.u32 %v563, 2147483648
    %v566 = vxor.u32 %v564, 2147483648
    %v567 = vmul.f32 %v565, 1.442695
    %v568 = vpow.pop %v567
    %v569 = vmul.f32 %v566, 1.442695
    %v570 = vpow.pop %v569
    %v571 = vadd.f32 %v568, 1.0
    %v572 = vadd.f32 %v570, 1.0
    %v573 = vrcp.pop %v571
    %v574 = vmul.f32 %v571, %v573
    %v575 = vsub.f32 1.0, %v574
    %v576 = vmul.f32 %v573, %v575
    %v577 = vadd.f32 %v573, %v576
    %vm578 = vweird.f32 %v571
    %vm579 = vweird.f32 %v573
    %vm580 = vmor %vm578, %vm579
    %v581 = vsel %vm580, %v573, %v577
    %v582 = vand.u32 2147483647, %v571
    %vm583 = vcmp.eq.f32.partialorder %v582, 8.507059e+37
    %v584 = vand.u32 %v571, 2147483648
    %v585 = vor.u32 1.1754944e-38, %v584
    %v586 = vsel %vm583, %v585, %v581
    %v587 = vmul.f32 1.0, %v586
    %v588 = vrcp.pop %v572
    %v589 = vmul.f32 %v572, %v588
    %v590 = vsub.f32 1.0, %v589
    %v591 = vmul.f32 %v588, %v590
    %v592 = vadd.f32 %v588, %v591
    %vm593 = vweird.f32 %v572
    %vm594 = vweird.f32 %v588
    %vm595 = vmor %vm593, %vm594
    %v596 = vsel %vm595, %v588, %v592
    %v597 = vand.u32 2147483647, %v572
    %vm598 = vcmp.eq.f32.partialorder %v597, 8.507059e+37
    %v599 = vand.u32 %v572, 2147483648
    %v600 = vor.u32 1.1754944e-38, %v599
    %v601 = vsel %vm598, %v600, %v596
    %v602 = vmul.f32 1.0, %v601
    %v603 = vmul.f32 %v602, 2.0
    %v604 = vsub.f32 %v603, 1.0
    %v605 = vsel %vm180, %v533, %v604
    %v606 = vmul.f32 %v587, %v605
    %607 = vrot.lane.b32.xlu0 %v606, 64
    %v608 = vpop.permute.xlu0 %607
    %v609 = vadd.f32 %v606, %v608
    %v610 = vtanh.pop %v609
    %v611 = vmul.f32 %v602, %v610
    %v612 = vld [vmem:[#allocation5] sm:$0xff]
    %v613 = vld [vmem:[#allocation5 + $0x8] sm:$0xff]
    %v614 = vld [vmem:[#allocation5 + $0x10] sm:$0xff]
    %v615 = vld [vmem:[#allocation5 + $0x18] sm:$0xff]
    %v616 = vld [vmem:[#allocation5 + $0x20] sm:$0xff]
    %v617 = vld [vmem:[#allocation5 + $0x28] sm:$0xff]
    %v618 = vld [vmem:[#allocation5 + $0x30] sm:$0xff]
    %v619 = vld [vmem:[#allocation5 + $0x38] sm:$0xff]
    %v620 = vld [vmem:[#allocation5 + $0x40] sm:$0xff]
    %v621 = vld [vmem:[#allocation5 + $0x48] sm:$0xff]
    %v622 = vld [vmem:[#allocation5 + $0x50] sm:$0xff]
    %v623 = vld [vmem:[#allocation5 + $0x58] sm:$0xff]
    %v624 = vld [vmem:[#allocation5 + $0x60] sm:$0xff]
    %v625 = vld [vmem:[#allocation5 + $0x68] sm:$0xff]
    %v626 = vld [vmem:[#allocation5 + $0x70] sm:$0xff]
    %v627 = vld [vmem:[#allocation5 + $0x78] sm:$0xff]
    %v628 = vld [vmem:[%s5] sm:$0x1]
    %v630 = vperm.slane %v628, 0
    %632 = vmatpush.msra.mxu0 %v627
    %633 = vmatpush.msra.mxu0 %v626
    %634 = vmatpush.msra.mxu0 %v625
    %635 = vmatpush.msra.mxu0 %v624
    %636 = vmatpush.msra.mxu0 %v623
    %637 = vmatpush.msra.mxu0 %v622
    %638 = vmatpush.msra.mxu0 %v621
    %639 = vmatpush.msra.mxu0 %v620
    %640 = vmatpush.msra.mxu0 %v619
    %641 = vmatpush.msra.mxu0 %v618
    %642 = vmatpush.msra.mxu0 %v617
    %643 = vmatpush.msra.mxu0 %v616
    %644 = vmatpush.msra.mxu0 %v615
    %645 = vmatpush.msra.mxu0 %v614
    %646 = vmatpush.msra.mxu0 %v613
    %647 = vmatpush.msra.mxu0 %v612
    %648 = vmatmul.f32.gmra.mxu0 %v611
    %v649 = vpop.f32.mrf.mxu0
    %v650 = vadd.f32 %v630, %v649
    %651 = vdwg.mxu0
    %652 = vst [vmem:[#allocation7] sm:$0xff] %v650
    // Predicated region
    $region34: #{tpu_custom_call.1} parent=1 // pred_check
      _
    $region35: #{tpu_custom_call.1} parent=1 // pred_check_branch
      %654 = sbr.rel (0) target = $region37
    $region36: #{tpu_custom_call.1} parent=1 // pred_region
      %656 = vsyncadd [#allocation4], 0
      %s658 = sshll.u32 [#allocation7], 4
      %s659 = int_to_ptr.vmem [resolvable:$true] %s658
      %s660 = sshll.u32 %s6, 4
      %s661 = int_to_ptr.hbm [resolvable:$true] %s660
      %663 = dma.vmem_to_hbm [thread:$0]  %s659, 128, %s661, [#allocation4]
    $region37: #{tpu_custom_call.1} parent=1 // pred_fallthru
      _
    // Predicated region
    $region38: #{tpu_custom_call.1} parent=1 // pred_check
      _
    $region39: #{tpu_custom_call.1} parent=1 // pred_check_branch
      %665 = sbr.rel (0) target = $region41
    $region40: #{tpu_custom_call.1} parent=1 // pred_region
      %667 = dma.done [#allocation4], 128
    $region41: #{tpu_custom_call.1} parent=1 // pred_fallthru
      _
    %668 = vsyncpa [#allocation3], 1
    %669 = vsyncpa [#allocation6], 1
    %670 = vsyncpa [#allocation4], 1

</llo_original>
